<compile_context>
chip_gen: v6e
topology: v6e:2x2x1
jax: 0.10.0
libtpu: 0.0.40
codegen_flags: <defaults>
</compile_context>

<pallas_src>
import jax
import jax.numpy as jnp
from jax.experimental import pallas as pl
from jax.experimental.pallas import tpu as pltpu

_DEFAULT_TILE_CAP = 2048                    # points per tile, upper bound
_VMEM_LIMIT_BYTES = 32 * 1024 * 1024        # <= scoped default on v5e/v6e/v7x
_VMEM_TILE_BUDGET = 24 * 1024 * 1024        # per-step block budget (leave headroom)
_TRANSPOSE_CHUNK = 128                      # rows per in-kernel transpose slab


def _round_up(x, m):
    return ((x + m - 1) // m) * m


def _pick_tile_n(n, bytes_per_point, cap=_DEFAULT_TILE_CAP, budget=_VMEM_TILE_BUDGET):
    """Point-dim tile: a single full-N block for small N, else the largest
    lane-aligned (multiple-of-128) candidate whose double-buffered blocks fit the
    VMEM budget. Partial last blocks are handled by Pallas via cdiv grids."""
    cap = max(128, (cap // 128) * 128)
    if n <= cap and n * bytes_per_point <= budget:
        return n
    cands = sorted({cap} | {t for t in (2048, 1024, 512, 256, 128) if t <= cap},
                   reverse=True)
    for t in cands:
        if t * bytes_per_point <= budget:
            return t
    return 128


def _chunked_transpose_store(src_ref, out_ref, row_off, chunk=_TRANSPOSE_CHUNK):
    """Transpose src_ref[0] (TILE_N, C) into out_ref[0, row_off:row_off+C, :] in
    static 128-row slabs to cap vreg pressure (all slice offsets are static)."""
    tile_n, c = src_ref.shape[1], src_ref.shape[2]
    n_full, rem = divmod(tile_n, chunk)
    for j in range(n_full):
        off = j * chunk
        out_ref[0, pl.ds(row_off, c), pl.ds(off, chunk)] = jnp.transpose(
            src_ref[0, pl.ds(off, chunk), :], (1, 0))
    if rem:
        off = n_full * chunk
        out_ref[0, pl.ds(row_off, c), pl.ds(off, rem)] = jnp.transpose(
            src_ref[0, pl.ds(off, rem), :], (1, 0))


def _concat_kernel(xyz_t_ref, feat_ref, out_ref):
    # xyz_t_ref: (1, 3, TILE_N)  feat_ref: (1, TILE_N, C)  out_ref: (1, 3+C, TILE_N)
    d_xyz = xyz_t_ref.shape[1]
    # xyz was pre-transposed by XLA: contiguous copy into channels [0, 3).
    out_ref[0, pl.ds(0, d_xyz), :] = xyz_t_ref[0]
    # Features: chunked (128, C) -> (C, 128) transposes into channels [3, 3+C).
    _chunked_transpose_store(feat_ref, out_ref, row_off=d_xyz)


def _transpose_kernel(x_ref, out_ref):
    # x_ref: (1, TILE_N, D)  out_ref: (1, D, TILE_N)
    _chunked_transpose_store(x_ref, out_ref, row_off=0)


def _compiler_params():
    return pltpu.CompilerParams(
        dimension_semantics=("parallel", "parallel"),
        vmem_limit_bytes=_VMEM_LIMIT_BYTES,
    )


def group_all(xyz, features=None, use_xyz=True, new_xyz=None, tile_cap=_DEFAULT_TILE_CAP):
    """Pallas implementation of GroupAll.forward (new_xyz is unused, as in torch)."""
    del new_xyz
    B, N, D_xyz = xyz.shape

    if features is not None and use_xyz:
        C = features.shape[-1]
        out_c = D_xyz + C
        out_dtype = jnp.result_type(xyz.dtype, features.dtype)
        itemsize = jnp.dtype(out_dtype).itemsize

        # Per-point VMEM cost of one grid step (layout-padded, double-buffered):
        #   feat block (TILE_N, C) + out block (out_c, TILE_N) + xyz block (3, TILE_N)
        bpp = 2 * (_round_up(C, 128) + _round_up(out_c, 8) + _round_up(D_xyz, 8)) * itemsize
        TILE_N = _pick_tile_n(N, bpp, tile_cap)
        n_tiles = pl.cdiv(N, TILE_N)

        # Tiny (B*N*3) pre-transpose done by XLA; avoids a 3-lane XLU transpose in-kernel.
        xyz_t = jnp.transpose(xyz.astype(out_dtype), (0, 2, 1))   # (B, 3, N)
        feats = features.astype(out_dtype)                        # (B, N, C)

        out = pl.pallas_call(
            _concat_kernel,
            out_shape=jax.ShapeDtypeStruct((B, out_c, N), out_dtype),
            grid=(B, n_tiles),
            in_specs=[
                pl.BlockSpec((1, D_xyz, TILE_N), lambda b, t: (b, 0, t)),
                pl.BlockSpec((1, TILE_N, C), lambda b, t: (b, t, 0)),
            ],
            out_specs=pl.BlockSpec((1, out_c, TILE_N), lambda b, t: (b, 0, t)),
            compiler_params=_compiler_params(),
            cost_estimate=pl.CostEstimate(
                flops=0, transcendentals=0,
                bytes_accessed=int(2 * B * N * out_c * itemsize)),
        )(xyz_t, feats)
        return out.reshape(B, out_c, 1, N)   # metadata-only reshape (group dim)

    # features is None -> just xyz; use_xyz=False -> just features.
    src = xyz if features is None else features
    D = src.shape[-1]

    if D < 8:
        # Narrow channels (e.g. bare xyz, D=3): a Pallas block would use D/128 lanes
        # and only add launch/layout cost; XLA's transpose is already at roofline.
        return jnp.transpose(src, (0, 2, 1)).reshape(B, D, 1, N)

    itemsize = jnp.dtype(src.dtype).itemsize
    bpp = 2 * (_round_up(D, 128) + _round_up(D, 8)) * itemsize
    TILE_N = _pick_tile_n(N, bpp, tile_cap)
    n_tiles = pl.cdiv(N, TILE_N)

    out = pl.pallas_call(
        _transpose_kernel,
        out_shape=jax.ShapeDtypeStruct((B, D, N), src.dtype),
        grid=(B, n_tiles),
        in_specs=[pl.BlockSpec((1, TILE_N, D), lambda b, t: (b, t, 0))],
        out_specs=pl.BlockSpec((1, D, TILE_N), lambda b, t: (b, 0, t)),
        compiler_params=_compiler_params(),
        cost_estimate=pl.CostEstimate(
            flops=0, transcendentals=0,
            bytes_accessed=int(2 * B * N * D * itemsize)),
    )(src)
    return out.reshape(B, D, 1, N)


def _reference_group_all(xyz, features=None, use_xyz=True):
    grouped_xyz = xyz[:, None, :, :]                       # (B, 1, N, 3)
    if features is not None:
        grouped_features = features[:, None, :, :]         # (B, 1, N, C)
        if use_xyz:
            new_features = jnp.concatenate(
                [grouped_xyz, grouped_features], axis=-1)  # (B, 1, N, 3+C)
        else:
            new_features = grouped_features
    else:
        new_features = grouped_xyz
    return jnp.transpose(new_features, (0, 3, 1, 2))       # (B, C', 1, N)


if __name__ == "__main__":
    key = jax.random.PRNGKey(0)
    k1, k2, k3, k4, k5 = jax.random.split(key, 5)

    # Small shapes consistent with the module.
    B, N, C = 2, 16, 4
    xyz = jax.random.normal(k1, (B, N, 3), dtype=jnp.float32)
    new_xyz = jnp.zeros((B, 1, 3), dtype=jnp.float32)      # unused by GroupAll.forward
    features = jax.random.normal(k2, (B, N, C), dtype=jnp.float32)

    out = jax.block_until_ready(group_all(xyz, features, use_xyz=True, new_xyz=new_xyz))
    ref = _reference_group_all(xyz, features, use_xyz=True)
    assert out.shape == (B, 3 + C, 1, N), out.shape
    assert jnp.allclose(out, ref), "mismatch vs reference (use_xyz=True)"

    # features=None path: (B, 3, 1, N) — narrow-D branch (XLA transpose per perf review).
    out2 = jax.block_until_ready(group_all(xyz, None))
    assert jnp.allclose(out2, _reference_group_all(xyz, None)), \
        "mismatch vs reference (no features)"

    # use_xyz=False with wide features: exercises the Pallas transpose kernel.
    Nw, Cw = 256, 64
    xyz_w = jax.random.normal(k3, (B, Nw, 3), dtype=jnp.float32)
    feat_w = jax.random.normal(k4, (B, Nw, Cw), dtype=jnp.float32)
    out3 = jax.block_until_ready(group_all(xyz_w, feat_w, use_xyz=False))
    assert out3.shape == (B, Cw, 1, Nw), out3.shape
    assert jnp.allclose(out3, _reference_group_all(xyz_w, feat_w, use_xyz=False)), \
        "mismatch vs reference (use_xyz=False)"

    # Multi-tile path with a partial (masked) last block: N=600, tile_cap=256 -> 3 tiles,
    # last block only 88 points wide (re-runs the N % TILE_N != 0 correctness check).
    B2, N2, C2 = 2, 600, 128
    xyz_l = jax.random.normal(k5, (B2, N2, 3), dtype=jnp.float32)
    feat_l = jax.random.normal(k1, (B2, N2, C2), dtype=jnp.float32)
    out_l = jax.block_until_ready(group_all(xyz_l, feat_l, use_xyz=True, tile_cap=256))
    ref_l = _reference_group_all(xyz_l, feat_l, use_xyz=True)
    assert out_l.shape == (B2, 3 + C2, 1, N2), out_l.shape
    assert jnp.allclose(out_l, ref_l), "mismatch vs reference (tiled, partial last block)"

    print("KERNEL_OK")
</pallas_src>

<mosaic_0001>
module attributes {stable_mosaic.version = 11 : i64} {
  func.func @_concat_kernel(%arg0: i32, %arg1: i32, %arg2: memref<1x3x16xf32, #tpu.memory_space<vmem>>, %arg3: memref<1x16x4xf32, #tpu.memory_space<vmem>>, %arg4: memref<1x7x16xf32, #tpu.memory_space<vmem>>) attributes {dimension_semantics = [#tpu.dimension_semantics<parallel>, #tpu.dimension_semantics<parallel>], iteration_bounds = array<i64: 2, 1>, scalar_prefetch = 0 : i64, scratch_operands = 0 : i64, tpu.core_type = #tpu.core_type<tc>, window_params = [{transform_indices = @transform_0, window_bounds = array<i64: 1, 3, 16>}, {transform_indices = @transform_1, window_bounds = array<i64: 1, 16, 4>}, {transform_indices = @transform_2, window_bounds = array<i64: 1, 7, 16>}]} {
    %c0 = arith.constant 0 : index
    %c0_0 = arith.constant 0 : index
    %c0_1 = arith.constant 0 : index
    %0 = vector.load %arg2[%c0, %c0_0, %c0_1] : memref<1x3x16xf32, #tpu.memory_space<vmem>>, vector<1x3x16xf32>
    %1 = vector.shape_cast %0 : vector<1x3x16xf32> to vector<3x16xf32>
    %c0_2 = arith.constant 0 : index
    %c0_3 = arith.constant 0 : index
    %c0_4 = arith.constant 0 : index
    %2 = vector.load %arg4[%c0_2, %c0_3, %c0_4] : memref<1x7x16xf32, #tpu.memory_space<vmem>>, vector<1x3x16xf32>
    %3 = vector.shape_cast %2 : vector<1x3x16xf32> to vector<3x16xf32>
    %4 = vector.shape_cast %1 : vector<3x16xf32> to vector<1x3x16xf32>
    tpu.vector_store %arg4[%c0_2, %c0_3, %c0_4], %4 {strides = array<i32>} : memref<1x7x16xf32, #tpu.memory_space<vmem>>, vector<1x3x16xf32>,
    %c0_5 = arith.constant 0 : index
    %c0_6 = arith.constant 0 : index
    %c0_7 = arith.constant 0 : index
    %5 = vector.load %arg3[%c0_5, %c0_6, %c0_7] : memref<1x16x4xf32, #tpu.memory_space<vmem>>, vector<1x16x4xf32>
    %6 = vector.shape_cast %5 : vector<1x16x4xf32> to vector<16x4xf32>
    %7 = tpu.transpose %6, [1, 0] : vector<16x4xf32> -> vector<4x16xf32>
    %c0_8 = arith.constant 0 : index
    %c3 = arith.constant 3 : index
    %c0_9 = arith.constant 0 : index
    %8 = vector.load %arg4[%c0_8, %c3, %c0_9] : memref<1x7x16xf32, #tpu.memory_space<vmem>>, vector<1x4x16xf32>
    %9 = vector.shape_cast %8 : vector<1x4x16xf32> to vector<4x16xf32>
    %10 = vector.shape_cast %7 : vector<4x16xf32> to vector<1x4x16xf32>
    tpu.vector_store %arg4[%c0_8, %c3, %c0_9], %10 {strides = array<i32>} : memref<1x7x16xf32, #tpu.memory_space<vmem>>, vector<1x4x16xf32>,
    return
  }
  func.func @transform_0(%arg0: i32, %arg1: i32) -> (i32, i32, i32) {
    %c0_i32 = arith.constant 0 : i32
    %c0_i32_0 = arith.constant 0 : i32
    return %arg0, %c0_i32, %arg1 : i32, i32, i32
  }
  func.func @transform_1(%arg0: i32, %arg1: i32) -> (i32, i32, i32) {
    %c0_i32 = arith.constant 0 : i32
    %c0_i32_0 = arith.constant 0 : i32
    return %arg0, %arg1, %c0_i32 : i32, i32, i32
  }
  func.func @transform_2(%arg0: i32, %arg1: i32) -> (i32, i32, i32) {
    %c0_i32 = arith.constant 0 : i32
    %c0_i32_0 = arith.constant 0 : i32
    return %arg0, %c0_i32, %arg1 : i32, i32, i32
  }
}

</mosaic_0001>

<llo_original>
// kernel: tpu_custom_call.1
$region0: #{tpu_custom_call.1}
  #allocation0 [shape = 'u32[]', space=smem, size = 0x4, offset = 0x4, fixed_abs, tag = 'smem constant byte address 0x4 - core index']
  #allocation1 [shape = 'u32[144,128]{1,0:T(1,128)}', space=vmem, size = 0x12000, scoped, tag = 'internal scratch']
  %s0 = inlined_call_operand.vmem [shape: f32[2,3,16], index: 0, kind: input, shape index: {}]
  %s1 = inlined_call_operand.vmem [shape: f32[2,16,4], index: 1, kind: input, shape index: {}]
  %s2 = inlined_call_operand.vmem [shape: f32[2,7,16], index: 2, kind: output, shape index: {}]
  %s3 = sld [smem:[#allocation0]]
  $region41: #{tpu_custom_call.1} parent=0
    _
  %s5 = ssub.s32 1, %s3
  %s6 = scalar_select 0, %s5, %s3
  loop: start=0, step=1, limit=4
  $region2: #{tpu_custom_call.1} parent=0 // loop_pre_header
    _
  $region3: #{tpu_custom_call.1} parent=0 // loop_header
    %s8 = sphi 0, %s12
    %p9 = scmp.ge.s32.totalorder %s8, 4
    %s15 = sphi 0, %s27
    %s16 = sphi 0, %s23
    %s17 = sphi 0, %s15
    %s18 = sphi 0, %s16
    %s19 = sphi 0, %s17
    %s20 = sphi 0, %s18
    %s32 = sphi 0, %s34
    %s35 = sphi 0, %s32
    %s36 = sphi 0, %s35
    %s52 = sphi 0, %s36
    %s60 = sphi 0, %s62
    %s63 = sphi 0, %s60
    %s64 = sphi 0, %s63
    %s80 = sphi 0, %s64
    %s88 = sphi 0, %s90
    %s91 = sphi 0, %s88
    %s92 = sphi 0, %s91
    %s108 = sphi 0, %s92
  $region4: #{tpu_custom_call.1} parent=0 // loop_header_branch
    %11 = sbr.rel (%p9) target = $region8
  $region5: #{tpu_custom_call.1} parent=0 // loop_body
    %s13 = ssub.s32 %s8, 1
    %s14 = ssub.s32 %s8, 2
    %s21 = sadd.s32 1, %s16
    %p22 = scmp.ge.s32.totalorder %s21, 1
    %s23 = scalar_select %p22, 0, %s21
    %s24 = sadd.s32 1, %s15
    %s25 = scalar_select %p22, %s24, %s15
    %p26 = scmp.ge.s32.totalorder %s25, 2
    %s27 = scalar_select %p26, 0, %s25
    %s28 = ssub.s32 %s15, %s27
    %s29 = ssub.s32 %s16, %s23
    %s30 = sor.u32 %s28, %s29
    %p31 = scmp.eq.s32.totalorder %s30, 0
    %s33 = sadd.s32 %s32, 1
    %s34 = scalar_select %p31, %s32, %s33
    %p37 = pneg %p31
    %p38 = scmp.eq.s32.totalorder %s8, 1
    %p39 = por %p37, %p38
    %p40 = scmp.ne.s32.totalorder %s32, %s35
    %p41 = scmp.eq.s32.totalorder %s8, 0
    %p42 = por %p40, %p41
    %p43 = scmp.ne.s32.totalorder %s32, %s35
    %p44 = scmp.eq.s32.totalorder %s13, 1
    %p45 = por %p43, %p44
    %p46 = scmp.ne.s32.totalorder %s35, %s36
    %p47 = scmp.eq.s32.totalorder %s13, 0
    %p48 = por %p46, %p47
    %p49 = scmp.ne.s32.totalorder %s35, %s36
    %p50 = scmp.eq.s32.totalorder %s14, 1
    %p51 = por %p49, %p50
    %p53 = scmp.ne.s32.totalorder %s36, %s52
    %p54 = scmp.eq.s32.totalorder %s14, 0
    %p55 = por %p53, %p54
    %s56 = ssub.s32 %s15, %s27
    %s57 = ssub.s32 %s16, %s23
    %s58 = sor.u32 %s56, %s57
    %p59 = scmp.eq.s32.totalorder %s58, 0
    %s61 = sadd.s32 %s60, 1
    %s62 = scalar_select %p59, %s60, %s61
    %p65 = pneg %p59
    %p66 = scmp.eq.s32.totalorder %s8, 1
    %p67 = por %p65, %p66
    %p68 = scmp.ne.s32.totalorder %s60, %s63
    %p69 = scmp.eq.s32.totalorder %s8, 0
    %p70 = por %p68, %p69
    %p71 = scmp.ne.s32.totalorder %s60, %s63
    %p72 = scmp.eq.s32.totalorder %s13, 1
    %p73 = por %p71, %p72
    %p74 = scmp.ne.s32.totalorder %s63, %s64
    %p75 = scmp.eq.s32.totalorder %s13, 0
    %p76 = por %p74, %p75
    %p77 = scmp.ne.s32.totalorder %s63, %s64
    %p78 = scmp.eq.s32.totalorder %s14, 1
    %p79 = por %p77, %p78
    %p81 = scmp.ne.s32.totalorder %s64, %s80
    %p82 = scmp.eq.s32.totalorder %s14, 0
    %p83 = por %p81, %p82
    %s84 = ssub.s32 %s15, %s27
    %s85 = ssub.s32 %s16, %s23
    %s86 = sor.u32 %s84, %s85
    %p87 = scmp.eq.s32.totalorder %s86, 0
    %s89 = sadd.s32 %s88, 1
    %s90 = scalar_select %p87, %s88, %s89
    %p93 = pneg %p87
    %p94 = scmp.eq.s32.totalorder %s8, 1
    %p95 = por %p93, %p94
    %p96 = scmp.ne.s32.totalorder %s88, %s91
    %p97 = scmp.eq.s32.totalorder %s8, 0
    %p98 = por %p96, %p97
    %p99 = scmp.ne.s32.totalorder %s88, %s91
    %p100 = scmp.eq.s32.totalorder %s13, 1
    %p101 = por %p99, %p100
    %p102 = scmp.ne.s32.totalorder %s91, %s92
    %p103 = scmp.eq.s32.totalorder %s13, 0
    %p104 = por %p102, %p103
    %p105 = scmp.ne.s32.totalorder %s91, %s92
    %p106 = scmp.eq.s32.totalorder %s14, 1
    %p107 = por %p105, %p106
    %p109 = scmp.ne.s32.totalorder %s92, %s108
    %p110 = scmp.eq.s32.totalorder %s14, 0
    %p111 = por %p109, %p110
    %p112 = scmp.le.s32.totalorder 1, %s8
    %p113 = scmp.lt.s32.totalorder %s8, 3
    %p114 = pnand %p112, %p113
    %p115 = pneg %p114
    // Predicated region
    $region9: #{tpu_custom_call.1} parent=5 // pred_check
      _
    $region10: #{tpu_custom_call.1} parent=5 // pred_check_branch
      %117 = sbr.rel (%p114) target = $region12
    $region11: #{tpu_custom_call.1} parent=5 // pred_region
      %s118 = ssub.s32 %s8, 1
    $region12: #{tpu_custom_call.1} parent=5 // pred_fallthru
      _
    %p119 = scmp.lt.s32.totalorder %s8, 2
    // Predicated region
    $region13: #{tpu_custom_call.1} parent=5 // pred_check
      %p120 = pneg %p119
    $region14: #{tpu_custom_call.1} parent=5 // pred_check_branch
      %122 = sbr.rel (%p120) target = $region16
    $region15: #{tpu_custom_call.1} parent=5 // pred_region
      // Predicated region
      $region17: #{tpu_custom_call.1} parent=15 // pred_check
        %p123 = pneg %p42
      $region18: #{tpu_custom_call.1} parent=15 // pred_check_branch
        %125 = sbr.rel (%p123) target = $region20
      $region19: #{tpu_custom_call.1} parent=15 // pred_region
        %p126 = scmp.lt.s32.totalorder %s15, 1
        %s127 = scalar_select %p126, %s15, 1
        %p128 = scmp.lt.s32.totalorder %s16, 0
        %s129 = scalar_select %p128, %s16, 0
        %s130 = sadd.s32 %s129, %s127
        %s131 = smul.addr %s130, 4
        %s132 = scalar_lea.vmem %s0, %s131
      $region20: #{tpu_custom_call.1} parent=15 // pred_fallthru
        _
      // Predicated region
      $region21: #{tpu_custom_call.1} parent=15 // pred_check
        %p133 = pneg %p70
      $region22: #{tpu_custom_call.1} parent=15 // pred_check_branch
        %135 = sbr.rel (%p133) target = $region24
      $region23: #{tpu_custom_call.1} parent=15 // pred_region
        %s136 = smul.u32 2, %s16
        %p137 = scmp.lt.s32.totalorder %s15, 1
        %s138 = scalar_select %p137, %s15, 1
        %p139 = scmp.lt.s32.totalorder %s136, 1
        %s140 = scalar_select %p139, %s136, 1
        %s141 = smul.addr %s138, 2
        %s142 = sadd.s32 %s140, %s141
        %s143 = smul.addr %s142, 8
        %s144 = scalar_lea.vmem %s1, %s143
        %s145 = smul.u32 2, %s16
      $region24: #{tpu_custom_call.1} parent=15 // pred_fallthru
        _
    $region16: #{tpu_custom_call.1} parent=5 // pred_fallthru
      _
    %p146 = scmp.le.s32.totalorder 1, %s8
    %p147 = scmp.lt.s32.totalorder %s8, 3
    %p148 = pnand %p146, %p147
    %p149 = pneg %p148
    // Predicated region
    $region25: #{tpu_custom_call.1} parent=5 // pred_check
      _
    $region26: #{tpu_custom_call.1} parent=5 // pred_check_branch
      %151 = sbr.rel (%p148) target = $region28
    $region27: #{tpu_custom_call.1} parent=5 // pred_region
      %s152 = ssub.s32 %s8, 1
      %p153 = scmp.lt.s32.totalorder %s17, 1
      %s154 = scalar_select %p153, %s17, 1
      %p155 = scmp.lt.s32.totalorder %s18, 0
      %s156 = scalar_select %p155, %s18, 0
      %s157 = sadd.s32 %s156, %s154
      %s158 = smul.addr %s157, 4
      %s159 = scalar_lea.vmem %s0, %s158
      %p160 = pneg %p48
      %p161 = pneg %p45
      %s162 = smul.u32 2, %s18
      %p163 = scmp.lt.s32.totalorder %s17, 1
      %s164 = scalar_select %p163, %s17, 1
      %p165 = scmp.lt.s32.totalorder %s162, 1
      %s166 = scalar_select %p165, %s162, 1
      %s167 = smul.addr %s164, 2
      %s168 = sadd.s32 %s166, %s167
      %s169 = smul.addr %s168, 8
      %s170 = scalar_lea.vmem %s1, %s169
      %p171 = pneg %p76
      %p172 = pneg %p73
      %p173 = pneg %p104
      %p174 = pneg %p101
      %p175 = scmp.lt.s32.totalorder %s17, 1
      %s176 = scalar_select %p175, %s17, 1
      %p177 = scmp.lt.s32.totalorder %s18, 0
      %s178 = scalar_select %p177, %s18, 0
      %s179 = sadd.s32 %s178, %s176
      %s180 = smul.addr %s179, 8
      %s181 = scalar_lea.vmem %s2, %s180
      %p182 = scmp.lt.s32.totalorder %s17, 1
      %s183 = scalar_select %p182, %s17, 1
      %p184 = scmp.lt.s32.totalorder %s18, 0
      %s185 = scalar_select %p184, %s18, 0
      %s186 = sadd.s32 %s185, %s183
      %s187 = smul.addr %s186, 4
      %s188 = scalar_lea.vmem %s0, %s187
      %s189 = smul.u32 2, %s18
      %p190 = scmp.lt.s32.totalorder %s17, 1
      %s191 = scalar_select %p190, %s17, 1
      %p192 = scmp.lt.s32.totalorder %s189, 1
      %s193 = scalar_select %p192, %s189, 1
      %s194 = smul.addr %s191, 2
      %s195 = sadd.s32 %s193, %s194
      %s196 = smul.addr %s195, 8
      %s197 = scalar_lea.vmem %s1, %s196
      %s198 = smul.u32 2, %s18
      %p199 = scmp.lt.s32.totalorder %s17, 1
      %s200 = scalar_select %p199, %s17, 1
      %p201 = scmp.lt.s32.totalorder %s18, 0
      %s202 = scalar_select %p201, %s18, 0
      %s203 = sadd.s32 %s202, %s200
      %s204 = smul.addr %s203, 8
      %s205 = scalar_lea.vmem %s2, %s204
      %v206 = vld [vmem:[%s188] sm:$0x7]
      %vm207 = vcmask 124928
      %208 = vst.msk [vmem:[%s205] sm:$0x7] %vm207, %v206
      %v209 = vld [vmem:[%s197] sm:$0xff]
      %v210 = vld [vmem:[%s197 + $0x8] sm:$0xff]
      %211 = vxpose.xlu0.b32.start [1/16] %v209, 128
      %212 = vxpose.xlu0.b32.cont [2/16] %v210, 128
      %213 = vxpose.xlu0.b32.cont [3/16] 0.0, 128
      %214 = vxpose.xlu0.b32.cont [4/16] 0.0, 128
      %215 = vxpose.xlu0.b32.cont [5/16] 0.0, 128
      %216 = vxpose.xlu0.b32.cont [6/16] 0.0, 128
      %217 = vxpose.xlu0.b32.cont [7/16] 0.0, 128
      %218 = vxpose.xlu0.b32.cont [8/16] 0.0, 128
      %219 = vxpose.xlu0.b32.cont [9/16] 0.0, 128
      %220 = vxpose.xlu0.b32.cont [10/16] 0.0, 128
      %221 = vxpose.xlu0.b32.cont [11/16] 0.0, 128
      %222 = vxpose.xlu0.b32.cont [12/16] 0.0, 128
      %223 = vxpose.xlu0.b32.cont [13/16] 0.0, 128
      %224 = vxpose.xlu0.b32.cont [14/16] 0.0, 128
      %225 = vxpose.xlu0.b32.cont [15/16] 0.0, 128
      %226 = vxpose.xlu0.b32.end [16/16] 0.0, 128
      %v227 = vpop.trf.xlu0
      %v228 = vpop.trf.xlu0
      %v229 = vpop.trf.xlu0
      %v230 = vpop.trf.xlu0
      %v231 = vpop.trf.xlu0
      %v232 = vpop.trf.xlu0
      %v233 = vpop.trf.xlu0
      %v234 = vpop.trf.xlu0
      %v235 = vpop.trf.xlu0
      %v236 = vpop.trf.xlu0
      %v237 = vpop.trf.xlu0
      %v238 = vpop.trf.xlu0
      %v239 = vpop.trf.xlu0
      %v240 = vpop.trf.xlu0
      %v241 = vpop.trf.xlu0
      %v242 = vpop.trf.xlu0
      %vm243 = vcmask 125952
      %244 = vst.msk [vmem:[%s205 + $0x3] sm:$0xf] %vm243, %v227
      %p245 = scmp.lt.s32.totalorder %s17, 1
      %s246 = scalar_select %p245, %s17, 1
      %p247 = scmp.lt.s32.totalorder %s18, 0
      %s248 = scalar_select %p247, %s18, 0
      %s249 = sadd.s32 %s248, %s246
      %s250 = smul.addr %s249, 8
      %s251 = scalar_lea.vmem %s2, %s250
      // Predicated region
      $region29: #{tpu_custom_call.1} parent=27 // pred_check
        %p252 = pneg %p101
      $region30: #{tpu_custom_call.1} parent=27 // pred_check_branch
        %254 = sbr.rel (%p252) target = $region32
      $region31: #{tpu_custom_call.1} parent=27 // pred_region
        _
      $region32: #{tpu_custom_call.1} parent=27 // pred_fallthru
        _
    $region28: #{tpu_custom_call.1} parent=5 // pred_fallthru
      _
    %p255 = scmp.le.s32.totalorder 2, %s8
    // Predicated region
    $region33: #{tpu_custom_call.1} parent=5 // pred_check
      %p256 = pneg %p255
    $region34: #{tpu_custom_call.1} parent=5 // pred_check_branch
      %258 = sbr.rel (%p256) target = $region36
    $region35: #{tpu_custom_call.1} parent=5 // pred_region
      %s259 = ssub.s32 %s8, 2
      // Predicated region
      $region37: #{tpu_custom_call.1} parent=35 // pred_check
        %p260 = pneg %p107
      $region38: #{tpu_custom_call.1} parent=35 // pred_check_branch
        %262 = sbr.rel (%p260) target = $region40
      $region39: #{tpu_custom_call.1} parent=35 // pred_region
        %p263 = scmp.lt.s32.totalorder %s19, 1
        %s264 = scalar_select %p263, %s19, 1
        %p265 = scmp.lt.s32.totalorder %s20, 0
        %s266 = scalar_select %p265, %s20, 0
        %s267 = sadd.s32 %s266, %s264
        %s268 = smul.addr %s267, 8
        %s269 = scalar_lea.vmem %s2, %s268
      $region40: #{tpu_custom_call.1} parent=35 // pred_fallthru
        _
    $region36: #{tpu_custom_call.1} parent=5 // pred_fallthru
      _
  $region6: #{tpu_custom_call.1} parent=0 // loop_footer
    %s12 = sadd.s32 1, %s8
  $region7: #{tpu_custom_call.1} parent=0 // loop_footer_branch
    %7 = sbr.rel target = $region3
  $region8: #{tpu_custom_call.1} parent=0 // loop_exit
    _

</llo_original>
